<compile_context>
chip_gen: v7x
topology: tpu7x:2x2x1
jax: 0.10.0
libtpu: 0.0.40
codegen_flags: <defaults>
</compile_context>

<pallas_src>
import math

import jax
import jax.numpy as jnp
from jax.experimental import pallas as pl
from jax.experimental.pallas import tpu as pltpu

_INV_SQRT2 = 1.0 / math.sqrt(2.0)


def _gelu_kernel(x_ref, o_ref):
    x = x_ref[...]
    xf = x.astype(jnp.float32)
    # Exact (erf-based) GELU: 0.5 * x * (1 + erf(x / sqrt(2)))  (torch default).
    # TODO(synk): on v7x, check the VALU slot in the bundle dump; if the erf
    # polynomial saturates it before HBM, swap in a tighter branch-free erf
    # (or a tanh-approx path for callers that accept it). v5e/v6e are HBM-bound.
    y = 0.5 * xf * (1.0 + jax.lax.erf(xf * _INV_SQRT2))
    o_ref[...] = y.astype(o_ref.dtype)


def _gelu_ref(x):
    xf = x.astype(jnp.float32)
    return (0.5 * xf * (1.0 + jax.lax.erf(xf * _INV_SQRT2))).astype(x.dtype)


def _row_granularity(itemsize: int) -> int:
    # Sublane packing: 4B -> 8 rows, 2B -> 16 rows, 1B -> 32 rows.
    return 8 * max(1, 4 // max(int(itemsize), 1))


def _chip_params():
    kind = ""
    try:
        kind = jax.devices()[0].device_kind.lower()
    except Exception:
        pass
    is_v7 = ("v7" in kind) or ("7x" in kind) or ("ironwood" in kind)
    if is_v7:
        # 64 MiB VMEM / 2 TCs per chip: smaller tiles, >= 4 grid steps for
        # large tensors (>= 2 per core), tight VMEM budget.
        return {"target_block_bytes": 4 << 20, "min_grid_steps": 4,
                "vmem_cap": 40 << 20}
    # v5e / v6e: single TC, 128 MiB VMEM -> bigger tiles, no forced grid split.
    return {"target_block_bytes": 8 << 20, "min_grid_steps": 1,
            "vmem_cap": 100 << 20}


def _pick_lane_width(n: int, gran: int) -> int:
    """Pick lane width C (multiple of 128) for an n divisible by 128."""
    candidates = (2048, 1024, 512, 256, 128)
    for c in candidates:            # prefer wide C with >= gran rows
        if n % c == 0 and n // c >= gran:
            return c
    for c in candidates:            # small tensors: any divisor
        if n % c == 0:
            return c
    return 128                      # unreachable when n % 128 == 0


def _make_in_spec(tr: int, c: int, num_steps: int):
    index_map = lambda i: (i, 0)
    if num_steps >= 3:
        # Triple-buffer the streaming input to smooth HBM DMA latency jitter.
        try:
            return pl.BlockSpec((tr, c), index_map,
                                pipeline_mode=pl.Buffered(3)), 3
        except TypeError:           # jax without BlockSpec.pipeline_mode
            pass
    return pl.BlockSpec((tr, c), index_map), 2


def _run_gelu_2d(x2, *, target_block_bytes, min_grid_steps, vmem_cap,
                 donate_input=False):
    R, c = x2.shape
    dtype = x2.dtype
    itemsize = jnp.dtype(dtype).itemsize
    gran = _row_granularity(itemsize)

    # Row tile sized by bytes, rounded to the sublane packing granularity.
    tr = max(target_block_bytes // (c * itemsize), 1)
    tr = max((tr // gran) * gran, gran)
    # v7x only: keep >= min_grid_steps blocks for large tensors so each
    # TensorCore gets >= 2 blocks and first/last DMA overlaps compute.
    if min_grid_steps > 1 and R >= min_grid_steps * gran:
        cap = max(gran, (R // min_grid_steps // gran) * gran)
        tr = min(tr, cap)
    if tr >= R:
        tr = R          # single full-extent block (always a legal block shape)

    num_steps = pl.cdiv(R, tr)
    grid = (num_steps,)

    in_spec, in_bufs = _make_in_spec(tr, c, num_steps)
    out_spec = pl.BlockSpec((tr, c), lambda i: (i, 0))

    tile_bytes = tr * c * itemsize
    # in_bufs input buffers + 2 output buffers + fixed headroom for Mosaic
    # internal scratch; capped per generation (v7x has only 64 MiB / TC).
    vmem_limit = (in_bufs + 2) * tile_bytes + (4 << 20)
    vmem_limit = min(vmem_cap, max(16 << 20, vmem_limit))

    return pl.pallas_call(
        _gelu_kernel,
        out_shape=jax.ShapeDtypeStruct((R, c), dtype),
        grid_spec=pltpu.PrefetchScalarGridSpec(
            num_scalar_prefetch=0,
            grid=grid,
            in_specs=[in_spec],
            out_specs=out_spec,
        ),
        compiler_params=pltpu.CompilerParams(
            dimension_semantics=("parallel",),
            vmem_limit_bytes=vmem_limit,
        ),
        input_output_aliases=({0: 0} if donate_input else {}),
    )(x2)


def gelu_pallas(x: jax.Array, *, target_block_bytes: int | None = None,
                donate_input: bool = False) -> jax.Array:
    """Exact-erf GELU applied elementwise via a Pallas TPU kernel."""
    orig_shape = x.shape
    n = x.size
    if n == 0:
        return x

    params = _chip_params()
    tbb = (target_block_bytes if target_block_bytes is not None
           else params["target_block_bytes"])
    itemsize = jnp.dtype(x.dtype).itemsize
    gran = _row_granularity(itemsize)

    def run(arr2d, donate=False):
        return _run_gelu_2d(arr2d, target_block_bytes=tbb,
                            min_grid_steps=params["min_grid_steps"],
                            vmem_cap=params["vmem_cap"], donate_input=donate)

    if n % 128 == 0:
        # Common path: lane-dense (R, C) slab view; no pad / extra copies.
        c = _pick_lane_width(n, gran)
        out2 = run(x.reshape(n // c, c), donate_input)
        return out2.reshape(orig_shape)

    flat = x.reshape(-1)
    n_bulk = (n // 128) * 128
    if n_bulk == 0:
        # Tiny tensor (< 128 elements): pad a single lane row (trivial cost).
        padded = jnp.pad(flat, (0, 128 - n)).reshape(1, 128)
        out = run(padded)
        return out.reshape(-1)[:n].reshape(orig_shape)

    # Fallback: kernel on the 128-divisible bulk, plain jnp on the < 128
    # element tail (avoids the old full-array pad + slice round trip).
    bulk = jax.lax.slice(flat, (0,), (n_bulk,))
    tail = jax.lax.slice(flat, (n_bulk,), (n,))
    c = _pick_lane_width(n_bulk, gran)
    bulk_out = run(bulk.reshape(n_bulk // c, c)).reshape(-1)
    tail_out = _gelu_ref(tail)
    return jnp.concatenate([bulk_out, tail_out]).reshape(orig_shape)


if __name__ == "__main__":
    key = jax.random.PRNGKey(0)
    # Small NCHW-style activation map (2048 elements -> lane-dense common path).
    x = jax.random.normal(key, (2, 4, 16, 16), dtype=jnp.float32)
    y = jax.block_until_ready(gelu_pallas(x))
    y_ref = _gelu_ref(x)
    assert y.shape == x.shape and y.dtype == x.dtype
    assert jnp.allclose(y, y_ref, atol=1e-5, rtol=1e-5), "mismatch vs reference"

    # Non-multiple-of-128 element count -> bulk kernel + jnp tail path.
    x2 = jax.random.normal(jax.random.PRNGKey(1), (3, 5, 17), dtype=jnp.float32)
    assert jnp.allclose(gelu_pallas(x2), _gelu_ref(x2), atol=1e-5, rtol=1e-5)

    # bf16, single-row slab.
    x3 = jax.random.normal(jax.random.PRNGKey(2), (4, 8, 32), dtype=jnp.bfloat16)
    assert jnp.allclose(gelu_pallas(x3).astype(jnp.float32),
                        _gelu_ref(x3).astype(jnp.float32), atol=2e-2, rtol=2e-2)

    # Force small tiles to exercise the multi-step / triple-buffered pipeline.
    x4 = jax.random.normal(jax.random.PRNGKey(3), (64, 1024), dtype=jnp.float32)
    y4 = jax.block_until_ready(gelu_pallas(x4, target_block_bytes=16 * 1024))
    assert jnp.allclose(y4, _gelu_ref(x4), atol=1e-5, rtol=1e-5)

    print("KERNEL_OK")
</pallas_src>

<mosaic_0001>
module attributes {stable_mosaic.version = 11 : i64} {
  func.func @_gelu_kernel(%arg0: i32, %arg1: memref<8x256xf32, #tpu.memory_space<vmem>>, %arg2: memref<8x256xf32, #tpu.memory_space<vmem>>) attributes {dimension_semantics = [#tpu.dimension_semantics<parallel>], iteration_bounds = array<i64: 1>, scalar_prefetch = 0 : i64, scratch_operands = 0 : i64, tpu.core_type = #tpu.core_type<tc>, window_params = [{transform_indices = @transform_0, window_bounds = array<i64: 8, 256>}, {transform_indices = @transform_1, window_bounds = array<i64: 8, 256>}]} {
    %c0 = arith.constant 0 : index
    %c0_0 = arith.constant 0 : index
    %0 = vector.load %arg1[%c0, %c0_0] : memref<8x256xf32, #tpu.memory_space<vmem>>, vector<8x256xf32>
    %cst = arith.constant 5.000000e-01 : f32
    %1 = vector.broadcast %cst : f32 to vector<8x256xf32>
    %2 = arith.mulf %1, %0 : vector<8x256xf32>
    %cst_1 = arith.constant 0.707106769 : f32
    %3 = vector.broadcast %cst_1 : f32 to vector<8x256xf32>
    %4 = arith.mulf %0, %3 : vector<8x256xf32>
    %5 = math.erf %4 : vector<8x256xf32>
    %cst_2 = arith.constant 1.000000e+00 : f32
    %6 = vector.broadcast %cst_2 : f32 to vector<8x256xf32>
    %7 = arith.addf %6, %5 : vector<8x256xf32>
    %8 = arith.mulf %2, %7 : vector<8x256xf32>
    %c0_3 = arith.constant 0 : index
    %c0_4 = arith.constant 0 : index
    %9 = vector.load %arg2[%c0_3, %c0_4] : memref<8x256xf32, #tpu.memory_space<vmem>>, vector<8x256xf32>
    tpu.vector_store %arg2[%c0_3, %c0_4], %8 {strides = array<i32>} : memref<8x256xf32, #tpu.memory_space<vmem>>, vector<8x256xf32>,
    return
  }
  func.func @transform_0(%arg0: i32) -> (i32, i32) {
    %c0_i32 = arith.constant 0 : i32
    %c0_i32_0 = arith.constant 0 : i32
    return %arg0, %c0_i32 : i32, i32
  }
  func.func @transform_1(%arg0: i32) -> (i32, i32) {
    %c0_i32 = arith.constant 0 : i32
    %c0_i32_0 = arith.constant 0 : i32
    return %arg0, %c0_i32 : i32, i32
  }
}

</mosaic_0001>

<llo_original>
// kernel: tpu_custom_call.1
$region0: #{tpu_custom_call.1}
  #allocation0 [shape = 'u32[]', space=smem, size = 0x4, offset = 0x4, fixed_abs, tag = 'smem constant byte address 0x4 - core index']
  #allocation1 [shape = 'u32[144,128]{1,0:T(1,128)}', space=vmem, size = 0x12000, scoped, tag = 'internal scratch']
  %s0 = inlined_call_operand.hbm [shape: f32[8,256], index: 0, kind: input, shape index: {}]
  %s1 = inlined_call_operand.hbm [shape: f32[8,256], index: 1, kind: output, shape index: {}]
  %s2 = sld [smem:[#allocation0]]
  $region18: #{tpu_custom_call.1} parent=0
    _
  %s4 = ssub.s32 1, %s2
  %s5 = scalar_select 0, %s4, %s2
  $region1: #{tpu_custom_call.1} parent=0
    #allocation2 [shape = 'u8[8192]{0}', space=vmem, size = 0x2000, scoped, tag = 'input window, operand 0, single buffered']
    #allocation3 [shape = 's32[1]{0}', space=sflag, size = 0x4, scoped, tag = 'scoped memory for tpu_custom_call.1']
    #allocation4 [shape = 's32[1]{0}', space=sflag, size = 0x4, scoped, tag = 'scoped memory for tpu_custom_call.1']
    #allocation5 [shape = 'u8[8192]{0}', space=vmem, size = 0x2000, scoped, tag = 'output window, operand 0, single buffered']
    %6 = vsyncpa [#allocation3], 0
    %7 = vsyncpa [#allocation4], 0
    // Predicated region
    $region2: #{tpu_custom_call.1} parent=1 // pred_check
      _
    $region3: #{tpu_custom_call.1} parent=1 // pred_check_branch
      %9 = sbr.rel (0) target = $region5
    $region4: #{tpu_custom_call.1} parent=1 // pred_region
      %s11 = ssub.s32 256, 256
      %12 = vsyncadd [#allocation3], %s11
      %s14 = sshll.u32 [#allocation2], 4
      %s15 = int_to_ptr.vmem [resolvable:$true] %s14
      %17 = dma.hbm_to_vmem [thread:$0]  %s0, 256, %s15, [#allocation3]
    $region5: #{tpu_custom_call.1} parent=1 // pred_fallthru
      _
    // Predicated region
    $region6: #{tpu_custom_call.1} parent=1 // pred_check
      _
    $region7: #{tpu_custom_call.1} parent=1 // pred_check_branch
      %19 = sbr.rel (0) target = $region9
    $region8: #{tpu_custom_call.1} parent=1 // pred_region
      %20 = dma.done [#allocation3], 256
    $region9: #{tpu_custom_call.1} parent=1 // pred_fallthru
      _
    %v21 = vld [vmem:[#allocation2] sm:$0xff]
    %v22 = vld [vmem:[#allocation2 + $0x8] sm:$0xff]
    %v23 = vmul.f32 %v21, 0.5
    %v24 = vmul.f32 %v22, 0.5
    %v25 = vmul.f32 %v21, 0.70710677
    %v26 = vmul.f32 %v22, 0.70710677
    %v27 = verf.f32.pop %v25
    %v28 = verf.f32.pop %v26
    %v29 = vadd.f32 %v27, 1.0
    %v30 = vadd.f32 %v28, 1.0
    %v31 = vmul.f32 %v23, %v29
    %v32 = vmul.f32 %v24, %v30
    %33 = vst [vmem:[#allocation5] sm:$0xff] %v31
    %34 = vst [vmem:[#allocation5 + $0x8] sm:$0xff] %v32
    // Predicated region
    $region10: #{tpu_custom_call.1} parent=1 // pred_check
      _
    $region11: #{tpu_custom_call.1} parent=1 // pred_check_branch
      %36 = sbr.rel (0) target = $region13
    $region12: #{tpu_custom_call.1} parent=1 // pred_region
      %s38 = ssub.s32 256, 256
      %39 = vsyncadd [#allocation4], %s38
      %s41 = sshll.u32 [#allocation5], 4
      %s42 = int_to_ptr.vmem [resolvable:$true] %s41
      %44 = dma.vmem_to_hbm [thread:$0]  %s42, 256, %s1, [#allocation4]
    $region13: #{tpu_custom_call.1} parent=1 // pred_fallthru
      _
    // Predicated region
    $region14: #{tpu_custom_call.1} parent=1 // pred_check
      _
    $region15: #{tpu_custom_call.1} parent=1 // pred_check_branch
      %46 = sbr.rel (0) target = $region17
    $region16: #{tpu_custom_call.1} parent=1 // pred_region
      %47 = dma.done [#allocation4], 256
    $region17: #{tpu_custom_call.1} parent=1 // pred_fallthru
      _
    %48 = vsyncpa [#allocation3], 1
    %49 = vsyncpa [#allocation4], 1

</llo_original>
